<compile_context>
chip_gen: v6e
topology: v6e:2x2x1
jax: 0.10.0
libtpu: 0.0.40
codegen_flags: <defaults>
</compile_context>

<pallas_src>
import functools

import jax
import jax.numpy as jnp
from jax import lax
from jax.experimental import pallas as pl
from jax.experimental.pallas import tpu as pltpu


def _round_up(v: int, m: int) -> int:
    return ((v + m - 1) // m) * m


def _mlp_kernel(n_layers, *refs):
    """refs = (x_ref, w0, b0, w1, b1, ..., w_{L-1}, b_{L-1}, out_ref)."""
    x_ref = refs[0]
    out_ref = refs[-1]
    params = refs[1:-1]

    compute_dtype = params[0].dtype          # bf16 when x streams as bf16
    tile_n = x_ref.shape[0]

    h = x_ref[...]                            # (tile_n, nfeat), node-major
    y = None
    for i in range(n_layers):                 # static unroll; depth is tiny
        w = params[2 * i][...]                # (out_pad, in_pad), compute dtype
        b = params[2 * i + 1][...]            # (out_pad, 1), f32
        if i == 0:
            # Contract feature axes of both operands ("A @ B.T" form) so the
            # result is feature-major (out_pad, tile_n): nodes live on the
            # 128-wide lane axis from here on.
            dnums = (((1,), (1,)), ((), ()))
        else:
            dnums = (((1,), (0,)), ((), ()))
        acc = lax.dot_general(w, h, dnums, preferred_element_type=jnp.float32)
        acc = acc + b                         # bias broadcast across lanes (f32)
        if i < n_layers - 1:
            # ReLU in f32; cast back to streaming dtype only to feed the MXU.
            # Dropout is the identity in eval mode.
            h = jnp.maximum(acc, 0.0).astype(compute_dtype)
        else:
            y = acc[0:1, :]                   # row 0 = the module's single unit

    # Lane-dense store: one (1, 1, tile_n) slab (nodes on lanes).
    out_ref[...] = y.reshape(1, 1, tile_n)


def gfs_node_regression_depth(x, weights, biases, *, tile_n=None, min_tiles=4):
    """Run the fused MLP, tiled over the node dimension (no host-side padding).

    x:       [N, nfeat]; bfloat16 preferred (halves the HBM stream), f32 works.
    weights: list of [out_dim, in_dim] arrays (PyTorch nn.Linear orientation).
    biases:  list of [out_dim] / [out_dim, 1] arrays.
    returns: [N, 1] float32
    """
    n_layers = len(weights)
    n, nfeat = x.shape
    compute_dtype = x.dtype

    # Tile size: big enough to amortize the ~0.35us per-grid-step cost, small
    # enough that (a) the grid keeps >= min_tiles steps (v7x has 2 TCs and the
    # pipeline needs >= 2 blocks to double-buffer) and (b) the double-buffered
    # x block + (feat, tile) f32 intermediates stay well inside scoped VMEM
    # even on v7x (64 MiB physical).  Multiples of 32 keep sublane tiling happy
    # for both f32 (8) and bf16 (16) blocks.
    if tile_n is None:
        tile_n = 8192 if jnp.dtype(compute_dtype).itemsize <= 2 else 4096
    per_tile_cap = _round_up(pl.cdiv(n, min_tiles), 32)
    tile = max(32, min(_round_up(tile_n, 32), per_tile_cap, _round_up(n, 32)))
    num_tiles = pl.cdiv(n, tile)
    # NOTE: no jnp.pad of x (that would add a full extra HBM pass over x). The
    # ragged last block is handled by Pallas; its garbage rows stay in their own
    # lanes (row-independent MLP) and are sliced off below.

    # Pad each layer's out-dim (and the next layer's in-dim) to a multiple of 8
    # with zeros, so every MXU matmul has M >= 8; padded rows stay exactly 0
    # (zero weights + zero bias -> relu(0) = 0) and never affect real outputs.
    w_pad, b_pad = [], []
    prev_out_pad = nfeat                      # layer-0 contraction dim = nfeat
    for w, b in zip(weights, biases):
        out_d, in_d = w.shape
        b2 = jnp.asarray(b, dtype=jnp.float32).reshape(out_d, 1)
        out_p = max(8, _round_up(out_d, 8))
        wp = jnp.zeros((out_p, prev_out_pad), dtype=compute_dtype)
        wp = wp.at[:out_d, :in_d].set(w.astype(compute_dtype))
        bp = jnp.zeros((out_p, 1), dtype=jnp.float32)
        bp = bp.at[:out_d].set(b2)
        w_pad.append(wp)
        b_pad.append(bp)
        prev_out_pad = out_p

    args = [x]
    # x streams one (tile, nfeat) block per grid step.
    in_specs = [pl.BlockSpec((tile, nfeat), lambda i: (i, 0))]
    # Weights/biases: constant index_map -> copied once, VMEM-resident across
    # all grid steps (Pallas skips re-copying blocks whose indices don't change).
    for wp, bp in zip(w_pad, b_pad):
        args.append(wp)
        args.append(bp)
        in_specs.append(pl.BlockSpec(wp.shape, lambda i: (0, 0)))
        in_specs.append(pl.BlockSpec(bp.shape, lambda i: (0, 0)))

    # Lane-dense output: (num_tiles, 1, tile) slab, reshaped/sliced to (N, 1)
    # in the (tiny, 4 B/row) epilogue below.
    out_spec = pl.BlockSpec((1, 1, tile), lambda i: (i, 0, 0))
    out_shape = jax.ShapeDtypeStruct((num_tiles, 1, tile), jnp.float32)

    kernel = functools.partial(_mlp_kernel, n_layers)

    y = pl.pallas_call(
        kernel,
        out_shape=out_shape,
        grid=(num_tiles,),
        in_specs=in_specs,
        out_specs=out_spec,
        compiler_params=pltpu.CompilerParams(
            dimension_semantics=("parallel",),     # megacore sharding on v7x
            vmem_limit_bytes=32 * 1024 * 1024,     # explicit budget; <= physical on v5e..v7x
        ),
    )(*args)

    return y.reshape(-1)[:n].reshape(n, 1)


def init_params(key, nfeat, n_depth, hidden_dim):
    """Kaiming-normal weights (PyTorch (out,in) orientation) + uniform biases."""
    dims = []
    if n_depth == 1:
        dims.append((1, nfeat))
    else:
        dims.append((hidden_dim, nfeat))
        for _ in range(n_depth - 2):
            dims.append((hidden_dim, hidden_dim))
        dims.append((1, hidden_dim))

    weights, biases = [], []
    for (fan_out, fan_in) in dims:
        key, kw, kb = jax.random.split(key, 3)
        std = jnp.sqrt(2.0 / fan_in)              # kaiming_normal_, fan_in mode
        w = std * jax.random.normal(kw, (fan_out, fan_in), dtype=jnp.float32)
        bound = 1.0 / jnp.sqrt(fan_in)
        b = jax.random.uniform(kb, (fan_out, 1), minval=-bound, maxval=bound,
                               dtype=jnp.float32)
        weights.append(w)
        biases.append(b)
    return weights, biases


def reference_forward(x, weights, biases, compute_dtype=None):
    """Plain-JAX reference; optionally mirrors the kernel's bf16 dataflow."""
    h = x.astype(jnp.float32)
    n_layers = len(weights)
    for i, (w, b) in enumerate(zip(weights, biases)):
        w = jnp.asarray(w, jnp.float32)
        b = jnp.asarray(b, jnp.float32).reshape(1, -1)
        if compute_dtype is not None:
            h = h.astype(compute_dtype).astype(jnp.float32)
            w = w.astype(compute_dtype).astype(jnp.float32)
        h = h @ w.T + b
        if i < n_layers - 1:
            h = jnp.maximum(h, 0.0)
    return h


if __name__ == "__main__":
    key = jax.random.PRNGKey(0)

    # Node-regression MLP: N nodes x nfeat features -> one scalar per node.
    # N is not a multiple of the tile so the ragged (no-pad) path is exercised.
    N, nfeat, hidden_dim, n_depth = 2000, 32, 32, 3

    key, kx = jax.random.split(key)
    x_f32 = jax.random.normal(kx, (N, nfeat), dtype=jnp.float32)
    x_bf16 = x_f32.astype(jnp.bfloat16)          # preferred streaming dtype

    weights, biases = init_params(key, nfeat, n_depth, hidden_dim)

    # Depth-3 path, bf16 streaming.
    y = jax.block_until_ready(gfs_node_regression_depth(x_bf16, weights, biases))
    y_ref = reference_forward(x_bf16, weights, biases, compute_dtype=jnp.bfloat16)
    assert y.shape == (N, 1)
    assert jnp.allclose(y, y_ref, atol=2e-3, rtol=2e-3), (
        "depth-3 mismatch, max abs err = %f" % float(jnp.max(jnp.abs(y - y_ref))))

    # Depth-1 branch (single Linear nfeat -> 1, no ReLU), f32 streaming.
    w1, b1 = init_params(jax.random.PRNGKey(1), nfeat, 1, hidden_dim)
    y1 = jax.block_until_ready(gfs_node_regression_depth(x_f32, w1, b1))
    y1_ref = reference_forward(x_f32, w1, b1)
    assert y1.shape == (N, 1)
    assert jnp.allclose(y1, y1_ref, atol=2e-2, rtol=2e-2), (
        "depth-1 mismatch, max abs err = %f" % float(jnp.max(jnp.abs(y1 - y1_ref))))

    print("KERNEL_OK")
</pallas_src>

<mosaic_0001>
module attributes {stable_mosaic.version = 11 : i64} {
  func.func @_mlp_kernel(%arg0: i32, %arg1: memref<512x32xbf16, #tpu.memory_space<vmem>>, %arg2: memref<32x32xbf16, #tpu.memory_space<vmem>>, %arg3: memref<32x1xf32, #tpu.memory_space<vmem>>, %arg4: memref<32x32xbf16, #tpu.memory_space<vmem>>, %arg5: memref<32x1xf32, #tpu.memory_space<vmem>>, %arg6: memref<8x32xbf16, #tpu.memory_space<vmem>>, %arg7: memref<8x1xf32, #tpu.memory_space<vmem>>, %arg8: memref<1x1x512xf32, #tpu.memory_space<vmem>>) attributes {dimension_semantics = [#tpu.dimension_semantics<parallel>], iteration_bounds = array<i64: 4>, scalar_prefetch = 0 : i64, scratch_operands = 0 : i64, tpu.core_type = #tpu.core_type<tc>, window_params = [{transform_indices = @transform_0, window_bounds = array<i64: 512, 32>}, {pipeline_mode = #tpu.pipeline_mode<synchronous>, transform_indices = @transform_1, window_bounds = array<i64: 32, 32>}, {pipeline_mode = #tpu.pipeline_mode<synchronous>, transform_indices = @transform_2, window_bounds = array<i64: 32, 1>}, {pipeline_mode = #tpu.pipeline_mode<synchronous>, transform_indices = @transform_3, window_bounds = array<i64: 32, 32>}, {pipeline_mode = #tpu.pipeline_mode<synchronous>, transform_indices = @transform_4, window_bounds = array<i64: 32, 1>}, {pipeline_mode = #tpu.pipeline_mode<synchronous>, transform_indices = @transform_5, window_bounds = array<i64: 8, 32>}, {pipeline_mode = #tpu.pipeline_mode<synchronous>, transform_indices = @transform_6, window_bounds = array<i64: 8, 1>}, {transform_indices = @transform_7, window_bounds = array<i64: 1, 1, 512>}]} {
    %c0 = arith.constant 0 : index
    %c0_0 = arith.constant 0 : index
    %0 = vector.load %arg1[%c0, %c0_0] : memref<512x32xbf16, #tpu.memory_space<vmem>>, vector<512x32xbf16>
    %c0_1 = arith.constant 0 : index
    %c0_2 = arith.constant 0 : index
    %1 = vector.load %arg2[%c0_1, %c0_2] : memref<32x32xbf16, #tpu.memory_space<vmem>>, vector<32x32xbf16>
    %c0_3 = arith.constant 0 : index
    %c0_4 = arith.constant 0 : index
    %2 = vector.load %arg3[%c0_3, %c0_4] : memref<32x1xf32, #tpu.memory_space<vmem>>, vector<32x1xf32>
    %cst = arith.constant dense<0.000000e+00> : vector<32x512xf32>
    %3 = tpu.matmul %1, %0, %cst {dimension_numbers = #tpu.dot_dimension_numbers<[1], [1], [0], [0], [0, 0, 1, 0], [], []>} : vector<32x32xbf16>, vector<512x32xbf16>, vector<32x512xf32> -> vector<32x512xf32>
    %4 = vector.broadcast %2 : vector<32x1xf32> to vector<32x512xf32>
    %5 = arith.addf %3, %4 : vector<32x512xf32>
    %cst_5 = arith.constant 0.000000e+00 : f32
    %6 = vector.broadcast %cst_5 : f32 to vector<32x512xf32>
    %7 = arith.maximumf %5, %6 : vector<32x512xf32>
    %8 = arith.truncf %7 : vector<32x512xf32> to vector<32x512xbf16>
    %c0_6 = arith.constant 0 : index
    %c0_7 = arith.constant 0 : index
    %9 = vector.load %arg4[%c0_6, %c0_7] : memref<32x32xbf16, #tpu.memory_space<vmem>>, vector<32x32xbf16>
    %c0_8 = arith.constant 0 : index
    %c0_9 = arith.constant 0 : index
    %10 = vector.load %arg5[%c0_8, %c0_9] : memref<32x1xf32, #tpu.memory_space<vmem>>, vector<32x1xf32>
    %cst_10 = arith.constant dense<0.000000e+00> : vector<32x512xf32>
    %11 = tpu.matmul %9, %8, %cst_10 {dimension_numbers = #tpu.dot_dimension_numbers<[1], [0], [0], [1], [0, 0, 1, 1], [], []>} : vector<32x32xbf16>, vector<32x512xbf16>, vector<32x512xf32> -> vector<32x512xf32>
    %12 = vector.broadcast %10 : vector<32x1xf32> to vector<32x512xf32>
    %13 = arith.addf %11, %12 : vector<32x512xf32>
    %cst_11 = arith.constant 0.000000e+00 : f32
    %14 = vector.broadcast %cst_11 : f32 to vector<32x512xf32>
    %15 = arith.maximumf %13, %14 : vector<32x512xf32>
    %16 = arith.truncf %15 : vector<32x512xf32> to vector<32x512xbf16>
    %c0_12 = arith.constant 0 : index
    %c0_13 = arith.constant 0 : index
    %17 = vector.load %arg6[%c0_12, %c0_13] : memref<8x32xbf16, #tpu.memory_space<vmem>>, vector<8x32xbf16>
    %c0_14 = arith.constant 0 : index
    %c0_15 = arith.constant 0 : index
    %18 = vector.load %arg7[%c0_14, %c0_15] : memref<8x1xf32, #tpu.memory_space<vmem>>, vector<8x1xf32>
    %cst_16 = arith.constant dense<0.000000e+00> : vector<8x512xf32>
    %19 = tpu.matmul %17, %16, %cst_16 {dimension_numbers = #tpu.dot_dimension_numbers<[1], [0], [0], [1], [0, 0, 1, 1], [], []>} : vector<8x32xbf16>, vector<32x512xbf16>, vector<8x512xf32> -> vector<8x512xf32>
    %20 = vector.broadcast %18 : vector<8x1xf32> to vector<8x512xf32>
    %21 = arith.addf %19, %20 : vector<8x512xf32>
    %22 = vector.extract_strided_slice %21 {offsets = [0, 0], sizes = [1, 512], strides = [1, 1]} : vector<8x512xf32> to vector<1x512xf32>
    %23 = vector.shape_cast %22 : vector<1x512xf32> to vector<1x1x512xf32>
    %c0_17 = arith.constant 0 : index
    %c0_18 = arith.constant 0 : index
    %c0_19 = arith.constant 0 : index
    %24 = vector.load %arg8[%c0_17, %c0_18, %c0_19] : memref<1x1x512xf32, #tpu.memory_space<vmem>>, vector<1x1x512xf32>
    tpu.vector_store %arg8[%c0_17, %c0_18, %c0_19], %23 {strides = array<i32>} : memref<1x1x512xf32, #tpu.memory_space<vmem>>, vector<1x1x512xf32>,
    return
  }
  func.func @transform_0(%arg0: i32) -> (i32, i32) {
    %c0_i32 = arith.constant 0 : i32
    %c0_i32_0 = arith.constant 0 : i32
    return %arg0, %c0_i32 : i32, i32
  }
  func.func @transform_1(%arg0: i32) -> (i32, i32) {
    %c0_i32 = arith.constant 0 : i32
    %c0_i32_0 = arith.constant 0 : i32
    %c0_i32_1 = arith.constant 0 : i32
    return %c0_i32, %c0_i32_0 : i32, i32
  }
  func.func @transform_2(%arg0: i32) -> (i32, i32) {
    %c0_i32 = arith.constant 0 : i32
    %c0_i32_0 = arith.constant 0 : i32
    %c0_i32_1 = arith.constant 0 : i32
    return %c0_i32, %c0_i32_0 : i32, i32
  }
  func.func @transform_3(%arg0: i32) -> (i32, i32) {
    %c0_i32 = arith.constant 0 : i32
    %c0_i32_0 = arith.constant 0 : i32
    %c0_i32_1 = arith.constant 0 : i32
    return %c0_i32, %c0_i32_0 : i32, i32
  }
  func.func @transform_4(%arg0: i32) -> (i32, i32) {
    %c0_i32 = arith.constant 0 : i32
    %c0_i32_0 = arith.constant 0 : i32
    %c0_i32_1 = arith.constant 0 : i32
    return %c0_i32, %c0_i32_0 : i32, i32
  }
  func.func @transform_5(%arg0: i32) -> (i32, i32) {
    %c0_i32 = arith.constant 0 : i32
    %c0_i32_0 = arith.constant 0 : i32
    %c0_i32_1 = arith.constant 0 : i32
    return %c0_i32, %c0_i32_0 : i32, i32
  }
  func.func @transform_6(%arg0: i32) -> (i32, i32) {
    %c0_i32 = arith.constant 0 : i32
    %c0_i32_0 = arith.constant 0 : i32
    %c0_i32_1 = arith.constant 0 : i32
    return %c0_i32, %c0_i32_0 : i32, i32
  }
  func.func @transform_7(%arg0: i32) -> (i32, i32, i32) {
    %c0_i32 = arith.constant 0 : i32
    %c0_i32_0 = arith.constant 0 : i32
    %c0_i32_1 = arith.constant 0 : i32
    return %arg0, %c0_i32, %c0_i32_0 : i32, i32, i32
  }
}

</mosaic_0001>

<llo_original>
// kernel: tpu_custom_call.1
$region0: #{tpu_custom_call.1}
  #allocation0 [shape = 'u32[]', space=smem, size = 0x4, offset = 0x4, fixed_abs, tag = 'smem constant byte address 0x4 - core index']
  #allocation1 [shape = 'u32[144,128]{1,0:T(1,128)}', space=vmem, size = 0x12000, scoped, tag = 'internal scratch']
  %s0 = inlined_call_operand.vmem [shape: bf16[2000,32], index: 0, kind: input, shape index: {}]
  %s1 = inlined_call_operand.vmem [shape: bf16[32,32], index: 1, kind: input, shape index: {}]
  %s2 = inlined_call_operand.vmem [shape: f32[32,1], index: 2, kind: input, shape index: {}]
  %s3 = inlined_call_operand.vmem [shape: bf16[32,32], index: 3, kind: input, shape index: {}]
  %s4 = inlined_call_operand.vmem [shape: f32[32,1], index: 4, kind: input, shape index: {}]
  %s5 = inlined_call_operand.vmem [shape: bf16[8,32], index: 5, kind: input, shape index: {}]
  %s6 = inlined_call_operand.vmem [shape: f32[8,1], index: 6, kind: input, shape index: {}]
  %s7 = inlined_call_operand.hbm [shape: f32[4,1,512], index: 7, kind: output, shape index: {}]
  %s8 = sld [smem:[#allocation0]]
  $region61: #{tpu_custom_call.1} parent=0
    _
  %s10 = ssub.s32 1, %s8
  %s11 = scalar_select 0, %s10, %s8
  $region1: #{tpu_custom_call.1} parent=0
    #allocation2 [shape = 'u8[4096]{0}', space=vmem, size = 0x1000, scoped, tag = 'output window, operand 0']
    #allocation3 [shape = 's32[2]{0}', space=sflag, size = 0x8, scoped, tag = 'scoped memory for tpu_custom_call.1']
    %12 = vsyncpa [#allocation3], 0
    %s13 = scalar_lea.sflag [#allocation3], 1
    %14 = vsyncpa %s13, 0
    loop: start=0, step=1, limit=6
    $region2: #{tpu_custom_call.1} parent=1 // loop_pre_header
      _
    $region3: #{tpu_custom_call.1} parent=1 // loop_header
      %s16 = sphi 0, %s20
      %p17 = scmp.ge.s32.totalorder %s16, 6
      %s26 = sphi 0, %s28
      %s29 = sphi 0, %s26
      %s30 = sphi 0, %s29
      %s46 = sphi 0, %s30
      %s50 = sphi 0, %s50
      %s52 = sphi 0, %s50
      %s53 = sphi 0, %s52
      %s67 = sphi 0, %s53
      %s71 = sphi 0, %s71
      %s73 = sphi 0, %s71
      %s74 = sphi 0, %s73
      %s88 = sphi 0, %s74
      %s92 = sphi 0, %s92
      %s94 = sphi 0, %s92
      %s95 = sphi 0, %s94
      %s109 = sphi 0, %s95
      %s113 = sphi 0, %s113
      %s115 = sphi 0, %s113
      %s116 = sphi 0, %s115
      %s130 = sphi 0, %s116
      %s134 = sphi 0, %s134
      %s136 = sphi 0, %s134
      %s137 = sphi 0, %s136
      %s151 = sphi 0, %s137
      %s155 = sphi 0, %s155
      %s157 = sphi 0, %s155
      %s158 = sphi 0, %s157
      %s172 = sphi 0, %s158
      %s178 = sphi 0, %s180
      %s181 = sphi 0, %s178
      %s182 = sphi 0, %s181
      %s198 = sphi 0, %s182
    $region4: #{tpu_custom_call.1} parent=1 // loop_header_branch
      %19 = sbr.rel (%p17) target = $region8
    $region5: #{tpu_custom_call.1} parent=1 // loop_body
      %s21 = ssub.s32 %s16, 1
      %s22 = ssub.s32 %s16, 2
      %s23 = sadd.s32 %s16, 1
      %s24 = ssub.s32 %s16, %s23
      %p25 = scmp.eq.s32.totalorder %s24, 0
      %s27 = sadd.s32 %s26, 1
      %s28 = scalar_select %p25, %s26, %s27
      %p31 = pneg %p25
      %p32 = scmp.eq.s32.totalorder %s16, 3
      %p33 = por %p31, %p32
      %p34 = scmp.ne.s32.totalorder %s26, %s29
      %p35 = scmp.eq.s32.totalorder %s16, 0
      %p36 = por %p34, %p35
      %p37 = scmp.ne.s32.totalorder %s26, %s29
      %p38 = scmp.eq.s32.totalorder %s21, 3
      %p39 = por %p37, %p38
      %p40 = scmp.ne.s32.totalorder %s29, %s30
      %p41 = scmp.eq.s32.totalorder %s21, 0
      %p42 = por %p40, %p41
      %p43 = scmp.ne.s32.totalorder %s29, %s30
      %p44 = scmp.eq.s32.totalorder %s22, 3
      %p45 = por %p43, %p44
      %p47 = scmp.ne.s32.totalorder %s30, %s46
      %p48 = scmp.eq.s32.totalorder %s22, 0
      %p49 = por %p47, %p48
      %s51 = sadd.s32 %s50, 1
      %p54 = scmp.eq.s32.totalorder %s16, 3
      %p55 = scmp.ne.s32.totalorder %s50, %s52
      %p56 = scmp.eq.s32.totalorder %s16, 0
      %p57 = por %p55, %p56
      %p58 = scmp.ne.s32.totalorder %s50, %s52
      %p59 = scmp.eq.s32.totalorder %s21, 3
      %p60 = por %p58, %p59
      %p61 = scmp.ne.s32.totalorder %s52, %s53
      %p62 = scmp.eq.s32.totalorder %s21, 0
      %p63 = por %p61, %p62
      %p64 = scmp.ne.s32.totalorder %s52, %s53
      %p65 = scmp.eq.s32.totalorder %s22, 3
      %p66 = por %p64, %p65
      %p68 = scmp.ne.s32.totalorder %s53, %s67
      %p69 = scmp.eq.s32.totalorder %s22, 0
      %p70 = por %p68, %p69
      %s72 = sadd.s32 %s71, 1
      %p75 = scmp.eq.s32.totalorder %s16, 3
      %p76 = scmp.ne.s32.totalorder %s71, %s73
      %p77 = scmp.eq.s32.totalorder %s16, 0
      %p78 = por %p76, %p77
      %p79 = scmp.ne.s32.totalorder %s71, %s73
      %p80 = scmp.eq.s32.totalorder %s21, 3
      %p81 = por %p79, %p80
      %p82 = scmp.ne.s32.totalorder %s73, %s74
      %p83 = scmp.eq.s32.totalorder %s21, 0
      %p84 = por %p82, %p83
      %p85 = scmp.ne.s32.totalorder %s73, %s74
      %p86 = scmp.eq.s32.totalorder %s22, 3
      %p87 = por %p85, %p86
      %p89 = scmp.ne.s32.totalorder %s74, %s88
      %p90 = scmp.eq.s32.totalorder %s22, 0
      %p91 = por %p89, %p90
      %s93 = sadd.s32 %s92, 1
      %p96 = scmp.eq.s32.totalorder %s16, 3
      %p97 = scmp.ne.s32.totalorder %s92, %s94
      %p98 = scmp.eq.s32.totalorder %s16, 0
      %p99 = por %p97, %p98
      %p100 = scmp.ne.s32.totalorder %s92, %s94
      %p101 = scmp.eq.s32.totalorder %s21, 3
      %p102 = por %p100, %p101
      %p103 = scmp.ne.s32.totalorder %s94, %s95
      %p104 = scmp.eq.s32.totalorder %s21, 0
      %p105 = por %p103, %p104
      %p106 = scmp.ne.s32.totalorder %s94, %s95
      %p107 = scmp.eq.s32.totalorder %s22, 3
      %p108 = por %p106, %p107
      %p110 = scmp.ne.s32.totalorder %s95, %s109
      %p111 = scmp.eq.s32.totalorder %s22, 0
      %p112 = por %p110, %p111
      %s114 = sadd.s32 %s113, 1
      %p117 = scmp.eq.s32.totalorder %s16, 3
      %p118 = scmp.ne.s32.totalorder %s113, %s115
      %p119 = scmp.eq.s32.totalorder %s16, 0
      %p120 = por %p118, %p119
      %p121 = scmp.ne.s32.totalorder %s113, %s115
      %p122 = scmp.eq.s32.totalorder %s21, 3
      %p123 = por %p121, %p122
      %p124 = scmp.ne.s32.totalorder %s115, %s116
      %p125 = scmp.eq.s32.totalorder %s21, 0
      %p126 = por %p124, %p125
      %p127 = scmp.ne.s32.totalorder %s115, %s116
      %p128 = scmp.eq.s32.totalorder %s22, 3
      %p129 = por %p127, %p128
      %p131 = scmp.ne.s32.totalorder %s116, %s130
      %p132 = scmp.eq.s32.totalorder %s22, 0
      %p133 = por %p131, %p132
      %s135 = sadd.s32 %s134, 1
      %p138 = scmp.eq.s32.totalorder %s16, 3
      %p139 = scmp.ne.s32.totalorder %s134, %s136
      %p140 = scmp.eq.s32.totalorder %s16, 0
      %p141 = por %p139, %p140
      %p142 = scmp.ne.s32.totalorder %s134, %s136
      %p143 = scmp.eq.s32.totalorder %s21, 3
      %p144 = por %p142, %p143
      %p145 = scmp.ne.s32.totalorder %s136, %s137
      %p146 = scmp.eq.s32.totalorder %s21, 0
      %p147 = por %p145, %p146
      %p148 = scmp.ne.s32.totalorder %s136, %s137
      %p149 = scmp.eq.s32.totalorder %s22, 3
      %p150 = por %p148, %p149
      %p152 = scmp.ne.s32.totalorder %s137, %s151
      %p153 = scmp.eq.s32.totalorder %s22, 0
      %p154 = por %p152, %p153
      %s156 = sadd.s32 %s155, 1
      %p159 = scmp.eq.s32.totalorder %s16, 3
      %p160 = scmp.ne.s32.totalorder %s155, %s157
      %p161 = scmp.eq.s32.totalorder %s16, 0
      %p162 = por %p160, %p161
      %p163 = scmp.ne.s32.totalorder %s155, %s157
      %p164 = scmp.eq.s32.totalorder %s21, 3
      %p165 = por %p163, %p164
      %p166 = scmp.ne.s32.totalorder %s157, %s158
      %p167 = scmp.eq.s32.totalorder %s21, 0
      %p168 = por %p166, %p167
      %p169 = scmp.ne.s32.totalorder %s157, %s158
      %p170 = scmp.eq.s32.totalorder %s22, 3
      %p171 = por %p169, %p170
      %p173 = scmp.ne.s32.totalorder %s158, %s172
      %p174 = scmp.eq.s32.totalorder %s22, 0
      %p175 = por %p173, %p174
      %s176 = ssub.s32 %s16, %s23
      %p177 = scmp.eq.s32.totalorder %s176, 0
      %s179 = sadd.s32 %s178, 1
      %s180 = scalar_select %p177, %s178, %s179
      %p183 = pneg %p177
      %p184 = scmp.eq.s32.totalorder %s16, 3
      %p185 = por %p183, %p184
      %p186 = scmp.ne.s32.totalorder %s178, %s181
      %p187 = scmp.eq.s32.totalorder %s16, 0
      %p188 = por %p186, %p187
      %p189 = scmp.ne.s32.totalorder %s178, %s181
      %p190 = scmp.eq.s32.totalorder %s21, 3
      %p191 = por %p189, %p190
      %p192 = scmp.ne.s32.totalorder %s181, %s182
      %p193 = scmp.eq.s32.totalorder %s21, 0
      %p194 = por %p192, %p193
      %p195 = scmp.ne.s32.totalorder %s181, %s182
      %p196 = scmp.eq.s32.totalorder %s22, 3
      %p197 = por %p195, %p196
      %p199 = scmp.ne.s32.totalorder %s182, %s198
      %p200 = scmp.eq.s32.totalorder %s22, 0
      %p201 = por %p199, %p200
      %p202 = scmp.le.s32.totalorder 1, %s16
      %p203 = scmp.lt.s32.totalorder %s16, 5
      %p204 = pnand %p202, %p203
      %p205 = pneg %p204
      // Predicated region
      $region9: #{tpu_custom_call.1} parent=5 // pred_check
        _
      $region10: #{tpu_custom_call.1} parent=5 // pred_check_branch
        %207 = sbr.rel (%p204) target = $region12
      $region11: #{tpu_custom_call.1} parent=5 // pred_region
        %s208 = ssub.s32 %s16, 1
        // Predicated region
        $region13: #{tpu_custom_call.1} parent=11 // pred_check
          %p209 = pneg %p63
        $region14: #{tpu_custom_call.1} parent=11 // pred_check_branch
          %211 = sbr.rel (%p209) target = $region16
        $region15: #{tpu_custom_call.1} parent=11 // pred_region
          _
        $region16: #{tpu_custom_call.1} parent=11 // pred_fallthru
          _
        // Predicated region
        $region17: #{tpu_custom_call.1} parent=11 // pred_check
          %p212 = pneg %p84
        $region18: #{tpu_custom_call.1} parent=11 // pred_check_branch
          %214 = sbr.rel (%p212) target = $region20
        $region19: #{tpu_custom_call.1} parent=11 // pred_region
          _
        $region20: #{tpu_custom_call.1} parent=11 // pred_fallthru
          _
        // Predicated region
        $region21: #{tpu_custom_call.1} parent=11 // pred_check
          %p215 = pneg %p105
        $region22: #{tpu_custom_call.1} parent=11 // pred_check_branch
          %217 = sbr.rel (%p215) target = $region24
        $region23: #{tpu_custom_call.1} parent=11 // pred_region
          _
        $region24: #{tpu_custom_call.1} parent=11 // pred_fallthru
          _
        // Predicated region
        $region25: #{tpu_custom_call.1} parent=11 // pred_check
          %p218 = pneg %p126
        $region26: #{tpu_custom_call.1} parent=11 // pred_check_branch
          %220 = sbr.rel (%p218) target = $region28
        $region27: #{tpu_custom_call.1} parent=11 // pred_region
          _
        $region28: #{tpu_custom_call.1} parent=11 // pred_fallthru
          _
        // Predicated region
        $region29: #{tpu_custom_call.1} parent=11 // pred_check
          %p221 = pneg %p147
        $region30: #{tpu_custom_call.1} parent=11 // pred_check_branch
          %223 = sbr.rel (%p221) target = $region32
        $region31: #{tpu_custom_call.1} parent=11 // pred_region
          _
        $region32: #{tpu_custom_call.1} parent=11 // pred_fallthru
          _
        // Predicated region
        $region33: #{tpu_custom_call.1} parent=11 // pred_check
          %p224 = pneg %p168
        $region34: #{tpu_custom_call.1} parent=11 // pred_check_branch
          %226 = sbr.rel (%p224) target = $region36
        $region35: #{tpu_custom_call.1} parent=11 // pred_region
          _
        $region36: #{tpu_custom_call.1} parent=11 // pred_fallthru
          _
      $region12: #{tpu_custom_call.1} parent=5 // pred_fallthru
        _
      %p227 = scmp.lt.s32.totalorder %s16, 4
      // Predicated region
      $region37: #{tpu_custom_call.1} parent=5 // pred_check
        %p228 = pneg %p227
      $region38: #{tpu_custom_call.1} parent=5 // pred_check_branch
        %230 = sbr.rel (%p228) target = $region40
      $region39: #{tpu_custom_call.1} parent=5 // pred_region
        // Predicated region
        $region41: #{tpu_custom_call.1} parent=39 // pred_check
          %p231 = pneg %p36
        $region42: #{tpu_custom_call.1} parent=39 // pred_check_branch
          %233 = sbr.rel (%p231) target = $region44
        $region43: #{tpu_custom_call.1} parent=39 // pred_region
          %s234 = smul.u32 64, %s16
          %s235 = ssub.s32 250, %s234
          %p236 = scmp.lt.s32.totalorder %s235, 64
          %s237 = scalar_select %p236, %s235, 64
          %s238 = smul.u32 64, %s237
          %p239 = scmp.lt.s32.totalorder %s234, 249
          %s240 = scalar_select %p239, %s234, 249
          %s241 = smul.addr %s240, 4
          %s242 = scalar_lea.vmem %s0, %s241
          %s243 = smul.u32 64, %s16
          %s244 = ssub.s32 250, %s243
          %p245 = scmp.lt.s32.totalorder %s244, 64
          %s246 = scalar_select %p245, %s244, 64
          %s247 = smul.u32 64, %s246
        $region44: #{tpu_custom_call.1} parent=39 // pred_fallthru
          _
      $region40: #{tpu_custom_call.1} parent=5 // pred_fallthru
        _
      %p248 = scmp.le.s32.totalorder 1, %s16
      %p249 = scmp.lt.s32.totalorder %s16, 5
      %p250 = pnand %p248, %p249
      %p251 = pneg %p250
      // Predicated region
      $region45: #{tpu_custom_call.1} parent=5 // pred_check
        _
      $region46: #{tpu_custom_call.1} parent=5 // pred_check_branch
        %253 = sbr.rel (%p250) target = $region48
      $region47: #{tpu_custom_call.1} parent=5 // pred_region
        %s254 = ssub.s32 %s16, 1
        %s255 = smul.u32 64, %s21
        %s256 = ssub.s32 250, %s255
        %p257 = scmp.lt.s32.totalorder %s256, 64
        %s258 = scalar_select %p257, %s256, 64
        %s259 = smul.u32 64, %s258
        %p260 = scmp.lt.s32.totalorder %s255, 249
        %s261 = scalar_select %p260, %s255, 249
        %s262 = smul.addr %s261, 4
        %s263 = scalar_lea.vmem %s0, %s262
        %p264 = pneg %p42
        %p265 = pneg %p39
        %p266 = pneg %p63
        %p267 = pneg %p60
        %p268 = pneg %p84
        %p269 = pneg %p81
        %p270 = pneg %p105
        %p271 = pneg %p102
        %p272 = pneg %p126
        %p273 = pneg %p123
        %p274 = pneg %p147
        %p275 = pneg %p144
        %p276 = pneg %p168
        %p277 = pneg %p165
        %p278 = pneg %p194
        %p279 = pneg %p191
        %s280 = sand.u32 %s181, 1
        %s281 = scalar_lea.sflag [#allocation3], %s280
        %s282 = sand.u32 %s181, 1
        %s283 = smul.addr %s282, 4
        %s284 = scalar_lea.vmem [#allocation2], %s283
        %s285 = smul.u32 64, %s21
        %s286 = ssub.s32 250, %s285
        %p287 = scmp.lt.s32.totalorder %s286, 64
        %s288 = scalar_select %p287, %s286, 64
        %s289 = smul.u32 64, %s288
        %p290 = scmp.lt.s32.totalorder %s285, 249
        %s291 = scalar_select %p290, %s285, 249
        %s292 = smul.addr %s291, 4
        %s293 = scalar_lea.vmem %s0, %s292
        %s294 = smul.u32 64, %s21
        %s295 = ssub.s32 250, %s294
        %p296 = scmp.lt.s32.totalorder %s295, 64
        %s297 = scalar_select %p296, %s295, 64
        %s298 = smul.u32 64, %s297
        %v300 = vld [vmem:[%s293] sm:$0xf]
        %v301 = vld [vmem:[%s293 + $0x4] sm:$0xf]
        %v302 = vld [vmem:[%s293 + $0x8] sm:$0xf]
        %v303 = vld [vmem:[%s293 + $0xc] sm:$0xf]
        %v304 = vld [vmem:[%s293 + $0x10] sm:$0xf]
        %v305 = vld [vmem:[%s293 + $0x14] sm:$0xf]
        %v306 = vld [vmem:[%s293 + $0x18] sm:$0xf]
        %v307 = vld [vmem:[%s293 + $0x1c] sm:$0xf]
        %v308 = vld [vmem:[%s293 + $0x20] sm:$0xf]
        %v309 = vld [vmem:[%s293 + $0x24] sm:$0xf]
        %v310 = vld [vmem:[%s293 + $0x28] sm:$0xf]
        %v311 = vld [vmem:[%s293 + $0x2c] sm:$0xf]
        %v312 = vld [vmem:[%s293 + $0x30] sm:$0xf]
        %v313 = vld [vmem:[%s293 + $0x34] sm:$0xf]
        %v314 = vld [vmem:[%s293 + $0x38] sm:$0xf]
        %v315 = vld [vmem:[%s293 + $0x3c] sm:$0xf]
        %v316 = vld [vmem:[%s293 + $0x40] sm:$0xf]
        %v317 = vld [vmem:[%s293 + $0x44] sm:$0xf]
        %v318 = vld [vmem:[%s293 + $0x48] sm:$0xf]
        %v319 = vld [vmem:[%s293 + $0x4c] sm:$0xf]
        %v320 = vld [vmem:[%s293 + $0x50] sm:$0xf]
        %v321 = vld [vmem:[%s293 + $0x54] sm:$0xf]
        %v322 = vld [vmem:[%s293 + $0x58] sm:$0xf]
        %v323 = vld [vmem:[%s293 + $0x5c] sm:$0xf]
        %v324 = vld [vmem:[%s293 + $0x60] sm:$0xf]
        %v325 = vld [vmem:[%s293 + $0x64] sm:$0xf]
        %v326 = vld [vmem:[%s293 + $0x68] sm:$0xf]
        %v327 = vld [vmem:[%s293 + $0x6c] sm:$0xf]
        %v328 = vld [vmem:[%s293 + $0x70] sm:$0xf]
        %v329 = vld [vmem:[%s293 + $0x74] sm:$0xf]
        %v330 = vld [vmem:[%s293 + $0x78] sm:$0xf]
        %v331 = vld [vmem:[%s293 + $0x7c] sm:$0xf]
        %v332 = vld [vmem:[%s293 + $0x80] sm:$0xf]
        %v333 = vld [vmem:[%s293 + $0x84] sm:$0xf]
        %v334 = vld [vmem:[%s293 + $0x88] sm:$0xf]
        %v335 = vld [vmem:[%s293 + $0x8c] sm:$0xf]
        %v336 = vld [vmem:[%s293 + $0x90] sm:$0xf]
        %v337 = vld [vmem:[%s293 + $0x94] sm:$0xf]
        %v338 = vld [vmem:[%s293 + $0x98] sm:$0xf]
        %v339 = vld [vmem:[%s293 + $0x9c] sm:$0xf]
        %v340 = vld [vmem:[%s293 + $0xa0] sm:$0xf]
        %v341 = vld [vmem:[%s293 + $0xa4] sm:$0xf]
        %v342 = vld [vmem:[%s293 + $0xa8] sm:$0xf]
        %v343 = vld [vmem:[%s293 + $0xac] sm:$0xf]
        %v344 = vld [vmem:[%s293 + $0xb0] sm:$0xf]
        %v345 = vld [vmem:[%s293 + $0xb4] sm:$0xf]
        %v346 = vld [vmem:[%s293 + $0xb8] sm:$0xf]
        %v347 = vld [vmem:[%s293 + $0xbc] sm:$0xf]
        %v348 = vld [vmem:[%s293 + $0xc0] sm:$0xf]
        %v349 = vld [vmem:[%s293 + $0xc4] sm:$0xf]
        %v350 = vld [vmem:[%s293 + $0xc8] sm:$0xf]
        %v351 = vld [vmem:[%s293 + $0xcc] sm:$0xf]
        %v352 = vld [vmem:[%s293 + $0xd0] sm:$0xf]
        %v353 = vld [vmem:[%s293 + $0xd4] sm:$0xf]
        %v354 = vld [vmem:[%s293 + $0xd8] sm:$0xf]
        %v355 = vld [vmem:[%s293 + $0xdc] sm:$0xf]
        %v356 = vld [vmem:[%s293 + $0xe0] sm:$0xf]
        %v357 = vld [vmem:[%s293 + $0xe4] sm:$0xf]
        %v358 = vld [vmem:[%s293 + $0xe8] sm:$0xf]
        %v359 = vld [vmem:[%s293 + $0xec] sm:$0xf]
        %v360 = vld [vmem:[%s293 + $0xf0] sm:$0xf]
        %v361 = vld [vmem:[%s293 + $0xf4] sm:$0xf]
        %v362 = vld [vmem:[%s293 + $0xf8] sm:$0xf]
        %v363 = vld [vmem:[%s293 + $0xfc] sm:$0xf]
        %v364 = vld [vmem:[%s1] sm:$0xf]
        %v365 = vld [vmem:[%s1 + $0x4] sm:$0xf]
        %v366 = vld [vmem:[%s1 + $0x8] sm:$0xf]
        %v367 = vld [vmem:[%s1 + $0xc] sm:$0xf]
        %v368 = vld [vmem:[%s2] sm:$0xff]
        %v369 = vld [vmem:[%s2 + $0x8] sm:$0xff]
        %v370 = vld [vmem:[%s2 + $0x10] sm:$0xff]
        %v371 = vld [vmem:[%s2 + $0x18] sm:$0xff]
        %373 = vset.pattern.permute.xlu0 0
        %374 = vperm.xlu0 %373, %v368
        %v375 = vpop.permute.xlu0 %374
        %378 = vset.pattern.permute.xlu0 0
        %379 = vperm.xlu0 %378, %v369
        %v380 = vpop.permute.xlu0 %379
        %383 = vset.pattern.permute.xlu0 0
        %384 = vperm.xlu0 %383, %v370
        %v385 = vpop.permute.xlu0 %384
        %388 = vset.pattern.permute.xlu0 0
        %389 = vperm.xlu0 %388, %v371
        %v390 = vpop.permute.xlu0 %389
        %v396 = vunpack.c.l.b16 %v364
        %v397 = vunpack.c.l.b16 %v365
        %v398 = vunpack.c.l.b16 %v366
        %v399 = vunpack.c.l.b16 %v367
        %v400 = vpack.c.b16 %v397, %v396
        %v401 = vpack.c.b16 %v399, %v398
        %v466 = vunpack.c.l.b16 %v300
        %v467 = vunpack.c.l.b16 %v301
        %v468 = vunpack.c.l.b16 %v302
        %v469 = vunpack.c.l.b16 %v303
        %v470 = vunpack.c.l.b16 %v304
        %v471 = vunpack.c.l.b16 %v305
        %v472 = vunpack.c.l.b16 %v306
        %v473 = vunpack.c.l.b16 %v307
        %v474 = vunpack.c.l.b16 %v308
        %v475 = vunpack.c.l.b16 %v309
        %v476 = vunpack.c.l.b16 %v310
        %v477 = vunpack.c.l.b16 %v311
        %v478 = vunpack.c.l.b16 %v312
        %v479 = vunpack.c.l.b16 %v313
        %v480 = vunpack.c.l.b16 %v314
        %v481 = vunpack.c.l.b16 %v315
        %v482 = vunpack.c.l.b16 %v316
        %v483 = vunpack.c.l.b16 %v317
        %v484 = vunpack.c.l.b16 %v318
        %v485 = vunpack.c.l.b16 %v319
        %v486 = vunpack.c.l.b16 %v320
        %v487 = vunpack.c.l.b16 %v321
        %v488 = vunpack.c.l.b16 %v322
        %v489 = vunpack.c.l.b16 %v323
        %v490 = vunpack.c.l.b16 %v324
        %v491 = vunpack.c.l.b16 %v325
        %v492 = vunpack.c.l.b16 %v326
        %v493 = vunpack.c.l.b16 %v327
        %v494 = vunpack.c.l.b16 %v328
        %v495 = vunpack.c.l.b16 %v329
        %v496 = vunpack.c.l.b16 %v330
        %v497 = vunpack.c.l.b16 %v331
        %v498 = vunpack.c.l.b16 %v332
        %v499 = vunpack.c.l.b16 %v333
        %v500 = vunpack.c.l.b16 %v334
        %v501 = vunpack.c.l.b16 %v335
        %v502 = vunpack.c.l.b16 %v336
        %v503 = vunpack.c.l.b16 %v337
        %v504 = vunpack.c.l.b16 %v338
        %v505 = vunpack.c.l.b16 %v339
        %v506 = vunpack.c.l.b16 %v340
        %v507 = vunpack.c.l.b16 %v341
        %v508 = vunpack.c.l.b16 %v342
        %v509 = vunpack.c.l.b16 %v343
        %v510 = vunpack.c.l.b16 %v344
        %v511 = vunpack.c.l.b16 %v345
        %v512 = vunpack.c.l.b16 %v346
        %v513 = vunpack.c.l.b16 %v347
        %v514 = vunpack.c.l.b16 %v348
        %v515 = vunpack.c.l.b16 %v349
        %v516 = vunpack.c.l.b16 %v350
        %v517 = vunpack.c.l.b16 %v351
        %v518 = vunpack.c.l.b16 %v352
        %v519 = vunpack.c.l.b16 %v353
        %v520 = vunpack.c.l.b16 %v354
        %v521 = vunpack.c.l.b16 %v355
        %v522 = vunpack.c.l.b16 %v356
        %v523 = vunpack.c.l.b16 %v357
        %v524 = vunpack.c.l.b16 %v358
        %v525 = vunpack.c.l.b16 %v359
        %v526 = vunpack.c.l.b16 %v360
        %v527 = vunpack.c.l.b16 %v361
        %v528 = vunpack.c.l.b16 %v362
        %v529 = vunpack.c.l.b16 %v363
        %v530 = vpack.c.b16 %v467, %v466
        %v531 = vpack.c.b16 %v469, %v468
        %v532 = vpack.c.b16 %v471, %v470
        %v533 = vpack.c.b16 %v473, %v472
        %v534 = vpack.c.b16 %v475, %v474
        %v535 = vpack.c.b16 %v477, %v476
        %v536 = vpack.c.b16 %v479, %v478
        %v537 = vpack.c.b16 %v481, %v480
        %v538 = vpack.c.b16 %v483, %v482
        %v539 = vpack.c.b16 %v485, %v484
        %v540 = vpack.c.b16 %v487, %v486
        %v541 = vpack.c.b16 %v489, %v488
        %v542 = vpack.c.b16 %v491, %v490
        %v543 = vpack.c.b16 %v493, %v492
        %v544 = vpack.c.b16 %v495, %v494
        %v545 = vpack.c.b16 %v497, %v496
        %v546 = vpack.c.b16 %v499, %v498
        %v547 = vpack.c.b16 %v501, %v500
        %v548 = vpack.c.b16 %v503, %v502
        %v549 = vpack.c.b16 %v505, %v504
        %v550 = vpack.c.b16 %v507, %v506
        %v551 = vpack.c.b16 %v509, %v508
        %v552 = vpack.c.b16 %v511, %v510
        %v553 = vpack.c.b16 %v513, %v512
        %v554 = vpack.c.b16 %v515, %v514
        %v555 = vpack.c.b16 %v517, %v516
        %v556 = vpack.c.b16 %v519, %v518
        %v557 = vpack.c.b16 %v521, %v520
        %v558 = vpack.c.b16 %v523, %v522
        %v559 = vpack.c.b16 %v525, %v524
        %v560 = vpack.c.b16 %v527, %v526
        %v561 = vpack.c.b16 %v529, %v528
        %vm562 = vcmask 261120
        %v564 = vsel %vm562, %v400, 0
        %v567 = vsel %vm562, %v401, 0
        %v570 = vsel %vm562, %v530, 0
        %v573 = vsel %vm562, %v531, 0
        %v576 = vsel %vm562, %v532, 0
        %v579 = vsel %vm562, %v533, 0
        %v582 = vsel %vm562, %v534, 0
        %v585 = vsel %vm562, %v535, 0
        %v588 = vsel %vm562, %v536, 0
        %v591 = vsel %vm562, %v537, 0
        %v594 = vsel %vm562, %v538, 0
        %v597 = vsel %vm562, %v539, 0
        %v600 = vsel %vm562, %v540, 0
        %v603 = vsel %vm562, %v541, 0
        %v606 = vsel %vm562, %v542, 0
        %v609 = vsel %vm562, %v543, 0
        %v612 = vsel %vm562, %v544, 0
        %v615 = vsel %vm562, %v545, 0
        %v618 = vsel %vm562, %v546, 0
        %v621 = vsel %vm562, %v547, 0
        %v624 = vsel %vm562, %v548, 0
        %v627 = vsel %vm562, %v549, 0
        %v630 = vsel %vm562, %v550, 0
        %v633 = vsel %vm562, %v551, 0
        %v636 = vsel %vm562, %v552, 0
        %v639 = vsel %vm562, %v553, 0
        %v642 = vsel %vm562, %v554, 0
        %v645 = vsel %vm562, %v555, 0
        %v648 = vsel %vm562, %v556, 0
        %v651 = vsel %vm562, %v557, 0
        %v654 = vsel %vm562, %v558, 0
        %v657 = vsel %vm562, %v559, 0
        %v660 = vsel %vm562, %v560, 0
        %v663 = vsel %vm562, %v561, 0
        %665 = vmatprep.subr.bf16.mxu0 0
        %666 = vmatpush1.bf16.xpose.msra.mxu0 %v591
        %667 = vmatprep.subr.bf16.mxu0 0
        %668 = vmatpush1.bf16.xpose.msra.mxu0 %v588
        %669 = vmatprep.subr.bf16.mxu0 0
        %670 = vmatpush1.bf16.xpose.msra.mxu0 %v585
        %671 = vmatprep.subr.bf16.mxu0 0
        %672 = vmatpush1.bf16.xpose.msra.mxu0 %v582
        %673 = vmatprep.subr.bf16.mxu0 0
        %674 = vmatpush1.bf16.xpose.msra.mxu0 %v579
        %675 = vmatprep.subr.bf16.mxu0 0
        %676 = vmatpush1.bf16.xpose.msra.mxu0 %v576
        %677 = vmatprep.subr.bf16.mxu0 0
        %678 = vmatpush1.bf16.xpose.msra.mxu0 %v573
        %679 = vmatprep.subr.bf16.mxu0 0
        %680 = vmatpush1.bf16.xpose.msra.mxu0 %v570
        %681 = vmatprep.subr.bf16.mxu0 0
        %682 = vmatpush2.bf16.xpose.msra.mxu0 %v615
        %683 = vmatprep.subr.bf16.mxu0 0
        %684 = vmatpush2.bf16.xpose.msra.mxu0 %v612
        %685 = vmatprep.subr.bf16.mxu0 0
        %686 = vmatpush2.bf16.xpose.msra.mxu0 %v609
        %687 = vmatprep.subr.bf16.mxu0 0
        %688 = vmatpush2.bf16.xpose.msra.mxu0 %v606
        %689 = vmatprep.subr.bf16.mxu0 0
        %690 = vmatpush2.bf16.xpose.msra.mxu0 %v603
        %691 = vmatprep.subr.bf16.mxu0 0
        %692 = vmatpush2.bf16.xpose.msra.mxu0 %v600
        %693 = vmatprep.subr.bf16.mxu0 0
        %694 = vmatpush2.bf16.xpose.msra.mxu0 %v597
        %695 = vmatprep.subr.bf16.mxu0 0
        %696 = vmatpush2.bf16.xpose.msra.mxu0 %v594
        %697 = vmatprep.mubr.bf16.mxu0 0
        %698 = vmatmul.mubr.bf16.gmra.mxu0 %v564
        %v699 = vpop.f32.mrf.mxu0
        %v700 = vadd.f32 %v375, %v699
        %v701 = vpop.f32.mrf.mxu0
        %v702 = vadd.f32 %v375, %v701
        %v703 = vpop.f32.mrf.mxu0
        %v704 = vadd.f32 %v380, %v703
        %v705 = vpop.f32.mrf.mxu0
        %v706 = vadd.f32 %v380, %v705
        %707 = vmatprep.mubr.bf16.mxu0 0
        %708 = vmatmul.mubr.bf16.gmra.mxu0 %v567
        %v709 = vpop.f32.mrf.mxu0
        %v710 = vadd.f32 %v385, %v709
        %v711 = vpop.f32.mrf.mxu0
        %v712 = vadd.f32 %v385, %v711
        %v713 = vpop.f32.mrf.mxu0
        %v714 = vadd.f32 %v390, %v713
        %v715 = vpop.f32.mrf.mxu0
        %v716 = vadd.f32 %v390, %v715
        %717 = vdwg.mxu0
        %718 = vmatprep.subr.bf16.mxu0 0
        %719 = vmatpush1.bf16.xpose.msra.mxu0 %v639
        %720 = vmatprep.subr.bf16.mxu0 0
        %721 = vmatpush1.bf16.xpose.msra.mxu0 %v636
        %722 = vmatprep.subr.bf16.mxu0 0
        %723 = vmatpush1.bf16.xpose.msra.mxu0 %v633
        %724 = vmatprep.subr.bf16.mxu0 0
        %725 = vmatpush1.bf16.xpose.msra.mxu0 %v630
        %726 = vmatprep.subr.bf16.mxu0 0
        %727 = vmatpush1.bf16.xpose.msra.mxu0 %v627
        %728 = vmatprep.subr.bf16.mxu0 0
        %729 = vmatpush1.bf16.xpose.msra.mxu0 %v624
        %730 = vmatprep.subr.bf16.mxu0 0
        %731 = vmatpush1.bf16.xpose.msra.mxu0 %v621
        %732 = vmatprep.subr.bf16.mxu0 0
        %733 = vmatpush1.bf16.xpose.msra.mxu0 %v618
        %734 = vmatprep.subr.bf16.mxu0 0
        %735 = vmatpush2.bf16.xpose.msra.mxu0 %v663
        %736 = vmatprep.subr.bf16.mxu0 0
        %737 = vmatpush2.bf16.xpose.msra.mxu0 %v660
        %738 = vmatprep.subr.bf16.mxu0 0
        %739 = vmatpush2.bf16.xpose.msra.mxu0 %v657
        %740 = vmatprep.subr.bf16.mxu0 0
        %741 = vmatpush2.bf16.xpose.msra.mxu0 %v654
        %742 = vmatprep.subr.bf16.mxu0 0
        %743 = vmatpush2.bf16.xpose.msra.mxu0 %v651
        %744 = vmatprep.subr.bf16.mxu0 0
        %745 = vmatpush2.bf16.xpose.msra.mxu0 %v648
        %746 = vmatprep.subr.bf16.mxu0 0
        %747 = vmatpush2.bf16.xpose.msra.mxu0 %v645
        %748 = vmatprep.subr.bf16.mxu0 0
        %749 = vmatpush2.bf16.xpose.msra.mxu0 %v642
        %750 = vmatprep.mubr.bf16.mxu0 0
        %751 = vmatmul.mubr.bf16.gmra.mxu0 %v564
        %v752 = vpop.f32.mrf.mxu0
        %v753 = vadd.f32 %v375, %v752
        %v754 = vpop.f32.mrf.mxu0
        %v755 = vadd.f32 %v375, %v754
        %v756 = vpop.f32.mrf.mxu0
        %v757 = vadd.f32 %v380, %v756
        %v758 = vpop.f32.mrf.mxu0
        %v759 = vadd.f32 %v380, %v758
        %760 = vmatprep.mubr.bf16.mxu0 0
        %761 = vmatmul.mubr.bf16.gmra.mxu0 %v567
        %v762 = vpop.f32.mrf.mxu0
        %v763 = vadd.f32 %v385, %v762
        %v764 = vpop.f32.mrf.mxu0
        %v765 = vadd.f32 %v385, %v764
        %v766 = vpop.f32.mrf.mxu0
        %v767 = vadd.f32 %v390, %v766
        %v768 = vpop.f32.mrf.mxu0
        %v769 = vadd.f32 %v390, %v768
        %770 = vdwg.mxu0
        %v771 = vmax.f32 %v700, 0.0
        %v772 = vmax.f32 %v702, 0.0
        %v773 = vmax.f32 %v753, 0.0
        %v774 = vmax.f32 %v755, 0.0
        %v775 = vmax.f32 %v704, 0.0
        %v776 = vmax.f32 %v706, 0.0
        %v777 = vmax.f32 %v757, 0.0
        %v778 = vmax.f32 %v759, 0.0
        %v779 = vmax.f32 %v710, 0.0
        %v780 = vmax.f32 %v712, 0.0
        %v781 = vmax.f32 %v763, 0.0
        %v782 = vmax.f32 %v765, 0.0
        %v783 = vmax.f32 %v714, 0.0
        %v784 = vmax.f32 %v716, 0.0
        %v785 = vmax.f32 %v767, 0.0
        %v786 = vmax.f32 %v769, 0.0
        %v787 = vpack.c.bf16 %v775, %v771
        %v788 = vpack.c.bf16 %v776, %v772
        %v789 = vpack.c.bf16 %v777, %v773
        %v790 = vpack.c.bf16 %v778, %v774
        %v791 = vpack.c.bf16 %v783, %v779
        %v792 = vpack.c.bf16 %v784, %v780
        %v793 = vpack.c.bf16 %v785, %v781
        %v794 = vpack.c.bf16 %v786, %v782
        %v795 = vld [vmem:[%s3] sm:$0xf]
        %v796 = vld [vmem:[%s3 + $0x4] sm:$0xf]
        %v797 = vld [vmem:[%s3 + $0x8] sm:$0xf]
        %v798 = vld [vmem:[%s3 + $0xc] sm:$0xf]
        %v799 = vld [vmem:[%s4] sm:$0xff]
        %v800 = vld [vmem:[%s4 + $0x8] sm:$0xff]
        %v801 = vld [vmem:[%s4 + $0x10] sm:$0xff]
        %v802 = vld [vmem:[%s4 + $0x18] sm:$0xff]
        %804 = vset.pattern.permute.xlu0 0
        %805 = vperm.xlu0 %804, %v799
        %v806 = vpop.permute.xlu0 %805
        %809 = vset.pattern.permute.xlu0 0
        %810 = vperm.xlu0 %809, %v800
        %v811 = vpop.permute.xlu0 %810
        %814 = vset.pattern.permute.xlu0 0
        %815 = vperm.xlu0 %814, %v801
        %v816 = vpop.permute.xlu0 %815
        %819 = vset.pattern.permute.xlu0 0
        %820 = vperm.xlu0 %819, %v802
        %v821 = vpop.permute.xlu0 %820
        %v827 = vunpack.c.l.b16 %v795
        %v828 = vunpack.c.l.b16 %v796
        %v829 = vunpack.c.l.b16 %v797
        %v830 = vunpack.c.l.b16 %v798
        %v831 = vpack.c.b16 %v828, %v827
        %v832 = vpack.c.b16 %v830, %v829
        %v834 = vsel %vm562, %v831, 0
        %v837 = vsel %vm562, %v832, 0
        %839 = vmatprep.subr.bf16.mxu0 0
        %840 = vmatpush1.bf16.msra.mxu0 0
        %841 = vmatprep.subr.bf16.mxu0 0
        %842 = vmatpush1.bf16.msra.mxu0 0
        %843 = vmatprep.subr.bf16.mxu0 0
        %844 = vmatpush1.bf16.msra.mxu0 0
        %845 = vmatprep.subr.bf16.mxu0 0
        %846 = vmatpush1.bf16.msra.mxu0 0
        %847 = vmatprep.subr.bf16.mxu0 0
        %848 = vmatpush1.bf16.msra.mxu0 0
        %849 = vmatprep.subr.bf16.mxu0 0
        %850 = vmatpush1.bf16.msra.mxu0 0
        %851 = vmatprep.subr.bf16.mxu0 %v792
        %852 = vmatpush1.bf16.msra.mxu0 %v791
        %853 = vmatprep.subr.bf16.mxu0 %v788
        %854 = vmatpush1.bf16.msra.mxu0 %v787
        %855 = vmatprep.subr.bf16.mxu0 0
        %856 = vmatpush2.bf16.msra.mxu0 0
        %857 = vmatprep.subr.bf16.mxu0 0
        %858 = vmatpush2.bf16.msra.mxu0 0
        %859 = vmatprep.subr.bf16.mxu0 0
        %860 = vmatpush2.bf16.msra.mxu0 0
        %861 = vmatprep.subr.bf16.mxu0 0
        %862 = vmatpush2.bf16.msra.mxu0 0
        %863 = vmatprep.subr.bf16.mxu0 0
        %864 = vmatpush2.bf16.msra.mxu0 0
        %865 = vmatprep.subr.bf16.mxu0 0
        %866 = vmatpush2.bf16.msra.mxu0 0
        %867 = vmatprep.subr.bf16.mxu0 0
        %868 = vmatpush2.bf16.msra.mxu0 0
        %869 = vmatprep.subr.bf16.mxu0 0
        %870 = vmatpush2.bf16.msra.mxu0 0
        %871 = vmatprep.mubr.bf16.mxu0 0
        %872 = vmatmul.mubr.bf16.gmra.mxu0 %v834
        %v873 = vpop.f32.mrf.mxu0
        %v874 = vadd.f32 %v806, %v873
        %v875 = vpop.f32.mrf.mxu0
        %v876 = vadd.f32 %v806, %v875
        %v877 = vpop.f32.mrf.mxu0
        %v878 = vadd.f32 %v811, %v877
        %v879 = vpop.f32.mrf.mxu0
        %v880 = vadd.f32 %v811, %v879
        %881 = vmatprep.mubr.bf16.mxu0 0
        %882 = vmatmul.mubr.bf16.gmra.mxu0 %v837
        %v883 = vpop.f32.mrf.mxu0
        %v884 = vadd.f32 %v816, %v883
        %v885 = vpop.f32.mrf.mxu0
        %v886 = vadd.f32 %v816, %v885
        %v887 = vpop.f32.mrf.mxu0
        %v888 = vadd.f32 %v821, %v887
        %v889 = vpop.f32.mrf.mxu0
        %v890 = vadd.f32 %v821, %v889
        %891 = vdwg.mxu0
        %892 = vmatprep.subr.bf16.mxu0 0
        %893 = vmatpush1.bf16.msra.mxu0 0
        %894 = vmatprep.subr.bf16.mxu0 0
        %895 = vmatpush1.bf16.msra.mxu0 0
        %896 = vmatprep.subr.bf16.mxu0 0
        %897 = vmatpush1.bf16.msra.mxu0 0
        %898 = vmatprep.subr.bf16.mxu0 0
        %899 = vmatpush1.bf16.msra.mxu0 0
        %900 = vmatprep.subr.bf16.mxu0 0
        %901 = vmatpush1.bf16.msra.mxu0 0
        %902 = vmatprep.subr.bf16.mxu0 0
        %903 = vmatpush1.bf16.msra.mxu0 0
        %904 = vmatprep.subr.bf16.mxu0 %v794
        %905 = vmatpush1.bf16.msra.mxu0 %v793
        %906 = vmatprep.subr.bf16.mxu0 %v790
        %907 = vmatpush1.bf16.msra.mxu0 %v789
        %908 = vmatprep.subr.bf16.mxu0 0
        %909 = vmatpush2.bf16.msra.mxu0 0
        %910 = vmatprep.subr.bf16.mxu0 0
        %911 = vmatpush2.bf16.msra.mxu0 0
        %912 = vmatprep.subr.bf16.mxu0 0
        %913 = vmatpush2.bf16.msra.mxu0 0
        %914 = vmatprep.subr.bf16.mxu0 0
        %915 = vmatpush2.bf16.msra.mxu0 0
        %916 = vmatprep.subr.bf16.mxu0 0
        %917 = vmatpush2.bf16.msra.mxu0 0
        %918 = vmatprep.subr.bf16.mxu0 0
        %919 = vmatpush2.bf16.msra.mxu0 0
        %920 = vmatprep.subr.bf16.mxu0 0
        %921 = vmatpush2.bf16.msra.mxu0 0
        %922 = vmatprep.subr.bf16.mxu0 0
        %923 = vmatpush2.bf16.msra.mxu0 0
        %924 = vmatprep.mubr.bf16.mxu0 0
        %925 = vmatmul.mubr.bf16.gmra.mxu0 %v834
        %v926 = vpop.f32.mrf.mxu0
        %v927 = vadd.f32 %v806, %v926
        %v928 = vpop.f32.mrf.mxu0
        %v929 = vadd.f32 %v806, %v928
        %v930 = vpop.f32.mrf.mxu0
        %v931 = vadd.f32 %v811, %v930
        %v932 = vpop.f32.mrf.mxu0
        %v933 = vadd.f32 %v811, %v932
        %934 = vmatprep.mubr.bf16.mxu0 0
        %935 = vmatmul.mubr.bf16.gmra.mxu0 %v837
        %v936 = vpop.f32.mrf.mxu0
        %v937 = vadd.f32 %v816, %v936
        %v938 = vpop.f32.mrf.mxu0
        %v939 = vadd.f32 %v816, %v938
        %v940 = vpop.f32.mrf.mxu0
        %v941 = vadd.f32 %v821, %v940
        %v942 = vpop.f32.mrf.mxu0
        %v943 = vadd.f32 %v821, %v942
        %944 = vdwg.mxu0
        %v945 = vmax.f32 %v874, 0.0
        %v946 = vmax.f32 %v876, 0.0
        %v947 = vmax.f32 %v927, 0.0
        %v948 = vmax.f32 %v929, 0.0
        %v949 = vmax.f32 %v878, 0.0
        %v950 = vmax.f32 %v880, 0.0
        %v951 = vmax.f32 %v931, 0.0
        %v952 = vmax.f32 %v933, 0.0
        %v953 = vmax.f32 %v884, 0.0
        %v954 = vmax.f32 %v886, 0.0
        %v955 = vmax.f32 %v937, 0.0
        %v956 = vmax.f32 %v939, 0.0
        %v957 = vmax.f32 %v888, 0.0
        %v958 = vmax.f32 %v890, 0.0
        %v959 = vmax.f32 %v941, 0.0
        %v960 = vmax.f32 %v943, 0.0
        %v961 = vpack.c.bf16 %v949, %v945
        %v962 = vpack.c.bf16 %v950, %v946
        %v963 = vpack.c.bf16 %v951, %v947
        %v964 = vpack.c.bf16 %v952, %v948
        %v965 = vpack.c.bf16 %v957, %v953
        %v966 = vpack.c.bf16 %v958, %v954
        %v967 = vpack.c.bf16 %v959, %v955
        %v968 = vpack.c.bf16 %v960, %v956
        %v969 = vld [vmem:[%s5] sm:$0xf]
        %v970 = vld [vmem:[%s6] sm:$0xff]
        %972 = vset.pattern.permute.xlu0 0
        %973 = vperm.xlu0 %972, %v970
        %v974 = vpop.permute.xlu0 %973
        %v977 = vsel %vm562, %v969, 0
        %979 = vmatprep.subr.bf16.mxu0 0
        %980 = vmatpush1.bf16.msra.mxu0 0
        %981 = vmatprep.subr.bf16.mxu0 0
        %982 = vmatpush1.bf16.msra.mxu0 0
        %983 = vmatprep.subr.bf16.mxu0 0
        %984 = vmatpush1.bf16.msra.mxu0 0
        %985 = vmatprep.subr.bf16.mxu0 0
        %986 = vmatpush1.bf16.msra.mxu0 0
        %987 = vmatprep.subr.bf16.mxu0 0
        %988 = vmatpush1.bf16.msra.mxu0 0
        %989 = vmatprep.subr.bf16.mxu0 0
        %990 = vmatpush1.bf16.msra.mxu0 0
        %991 = vmatprep.subr.bf16.mxu0 %v966
        %992 = vmatpush1.bf16.msra.mxu0 %v965
        %993 = vmatprep.subr.bf16.mxu0 %v962
        %994 = vmatpush1.bf16.msra.mxu0 %v961
        %995 = vmatprep.subr.bf16.mxu0 0
        %996 = vmatpush2.bf16.msra.mxu0 0
        %997 = vmatprep.subr.bf16.mxu0 0
        %998 = vmatpush2.bf16.msra.mxu0 0
        %999 = vmatprep.subr.bf16.mxu0 0
        %1000 = vmatpush2.bf16.msra.mxu0 0
        %1001 = vmatprep.subr.bf16.mxu0 0
        %1002 = vmatpush2.bf16.msra.mxu0 0
        %1003 = vmatprep.subr.bf16.mxu0 0
        %1004 = vmatpush2.bf16.msra.mxu0 0
        %1005 = vmatprep.subr.bf16.mxu0 0
        %1006 = vmatpush2.bf16.msra.mxu0 0
        %1007 = vmatprep.subr.bf16.mxu0 0
        %1008 = vmatpush2.bf16.msra.mxu0 0
        %1009 = vmatprep.subr.bf16.mxu0 0
        %1010 = vmatpush2.bf16.msra.mxu0 0
        %1011 = vmatprep.mubr.bf16.mxu0 0
        %1012 = vmatmul.mubr.bf16.gmra.mxu0 %v977
        %v1013 = vpop.f32.mrf.mxu0
        %v1014 = vadd.f32 %v974, %v1013
        %v1015 = vpop.f32.mrf.mxu0
        %v1016 = vadd.f32 %v974, %v1015
        %v1017 = vpop.f32.mrf.mxu0
        %v1018 = vpop.f32.mrf.mxu0
        %1019 = vdwg.mxu0
        %1020 = vmatprep.subr.bf16.mxu0 0
        %1021 = vmatpush1.bf16.msra.mxu0 0
        %1022 = vmatprep.subr.bf16.mxu0 0
        %1023 = vmatpush1.bf16.msra.mxu0 0
        %1024 = vmatprep.subr.bf16.mxu0 0
        %1025 = vmatpush1.bf16.msra.mxu0 0
        %1026 = vmatprep.subr.bf16.mxu0 0
        %1027 = vmatpush1.bf16.msra.mxu0 0
        %1028 = vmatprep.subr.bf16.mxu0 0
        %1029 = vmatpush1.bf16.msra.mxu0 0
        %1030 = vmatprep.subr.bf16.mxu0 0
        %1031 = vmatpush1.bf16.msra.mxu0 0
        %1032 = vmatprep.subr.bf16.mxu0 %v968
        %1033 = vmatpush1.bf16.msra.mxu0 %v967
        %1034 = vmatprep.subr.bf16.mxu0 %v964
        %1035 = vmatpush1.bf16.msra.mxu0 %v963
        %1036 = vmatprep.subr.bf16.mxu0 0
        %1037 = vmatpush2.bf16.msra.mxu0 0
        %1038 = vmatprep.subr.bf16.mxu0 0
        %1039 = vmatpush2.bf16.msra.mxu0 0
        %1040 = vmatprep.subr.bf16.mxu0 0
        %1041 = vmatpush2.bf16.msra.mxu0 0
        %1042 = vmatprep.subr.bf16.mxu0 0
        %1043 = vmatpush2.bf16.msra.mxu0 0
        %1044 = vmatprep.subr.bf16.mxu0 0
        %1045 = vmatpush2.bf16.msra.mxu0 0
        %1046 = vmatprep.subr.bf16.mxu0 0
        %1047 = vmatpush2.bf16.msra.mxu0 0
        %1048 = vmatprep.subr.bf16.mxu0 0
        %1049 = vmatpush2.bf16.msra.mxu0 0
        %1050 = vmatprep.subr.bf16.mxu0 0
        %1051 = vmatpush2.bf16.msra.mxu0 0
        %1052 = vmatprep.mubr.bf16.mxu0 0
        %1053 = vmatmul.mubr.bf16.gmra.mxu0 %v977
        %v1054 = vpop.f32.mrf.mxu0
        %v1055 = vadd.f32 %v974, %v1054
        %v1056 = vpop.f32.mrf.mxu0
        %v1057 = vadd.f32 %v974, %v1056
        %v1058 = vpop.f32.mrf.mxu0
        %v1059 = vpop.f32.mrf.mxu0
        %1060 = vdwg.mxu0
        %v1065 = vcombine.low %v1014, %v1016
        %v1066 = vcombine.low %v1055, %v1057
        %v1068 = vunpack.c.l.s4 1966171168
        %v1069 = vunpack.c.0.s8 %v1068
        %v1070 = vlaneseq
        %v1071 = vshrl.u32 %v1070, 7
        %v1072 = vsub.s32 %v1069, %v1071
        %v1073 = vrot.slane %v1065, %v1072
        %v1075 = vunpack.c.l.s4 1966171168
        %v1076 = vunpack.c.0.s8 %v1075
        %v1077 = vlaneseq
        %v1078 = vshrl.u32 %v1077, 7
        %v1079 = vsub.s32 %v1076, %v1078
        %v1080 = vrot.slane %v1066, %v1079
        %v1081 = vcombine.low %v1073, %v1080
        %v1083 = vunpack.c.l.s4 1966171168
        %v1084 = vunpack.c.0.s8 %v1083
        %v1085 = vlaneseq
        %v1086 = vshrl.u32 %v1085, 7
        %v1087 = vsub.s32 %v1084, %v1086
        %v1088 = vrot.slane %v1081, %v1087
        %v1090 = vlaneseq
        %vm1091 = vcmp.ge.s32.totalorder %v1090, 0
        %vm1092 = vcmp.lt.s32.totalorder %v1090, 512
        %vm1093 = vmand %vm1091, %vm1092
        %1094 = vst.msk [vmem:[%s284] sm:$0xf] %vm1093, %v1088
        %s1095 = sand.u32 %s181, 1
        %s1096 = scalar_lea.sflag [#allocation3], %s1095
        %s1097 = sand.u32 %s181, 1
        %s1098 = smul.addr %s1097, 4
        %s1099 = scalar_lea.vmem [#allocation2], %s1098
        // Predicated region
        $region49: #{tpu_custom_call.1} parent=47 // pred_check
          %p1100 = pneg %p191
        $region50: #{tpu_custom_call.1} parent=47 // pred_check_branch
          %1102 = sbr.rel (%p1100) target = $region52
        $region51: #{tpu_custom_call.1} parent=47 // pred_region
          %s1104 = ssub.s32 64, 64
          %1105 = vsyncadd %s1096, %s1104
          %s1106 = smul.addr %s21, 4
          %s1107 = smul.addr %s1106, 16
          %s1108 = scalar_lea.hbm %s7, %s1107
          %s1110 = sshll.u32 %s1099, 4
          %s1111 = int_to_ptr.vmem [resolvable:$true] %s1110
          %1113 = dma.vmem_to_hbm [thread:$0]  %s1111, 64, %s1108, %s1096
        $region52: #{tpu_custom_call.1} parent=47 // pred_fallthru
          _
      $region48: #{tpu_custom_call.1} parent=5 // pred_fallthru
        _
      %p1114 = scmp.le.s32.totalorder 2, %s16
      // Predicated region
      $region53: #{tpu_custom_call.1} parent=5 // pred_check
        %p1115 = pneg %p1114
      $region54: #{tpu_custom_call.1} parent=5 // pred_check_branch
        %1117 = sbr.rel (%p1115) target = $region56
      $region55: #{tpu_custom_call.1} parent=5 // pred_region
        %s1118 = ssub.s32 %s16, 2
        // Predicated region
        $region57: #{tpu_custom_call.1} parent=55 // pred_check
          %p1119 = pneg %p197
        $region58: #{tpu_custom_call.1} parent=55 // pred_check_branch
          %1121 = sbr.rel (%p1119) target = $region60
        $region59: #{tpu_custom_call.1} parent=55 // pred_region
          %s1122 = sand.u32 %s182, 1
          %s1123 = scalar_lea.sflag [#allocation3], %s1122
          %s1124 = sand.u32 %s182, 1
          %s1125 = smul.addr %s1124, 4
          %s1126 = scalar_lea.vmem [#allocation2], %s1125
          %1127 = dma.done %s1123, 64
        $region60: #{tpu_custom_call.1} parent=55 // pred_fallthru
          _
      $region56: #{tpu_custom_call.1} parent=5 // pred_fallthru
        _
    $region6: #{tpu_custom_call.1} parent=1 // loop_footer
      %s20 = sadd.s32 1, %s16
    $region7: #{tpu_custom_call.1} parent=1 // loop_footer_branch
      %15 = sbr.rel target = $region3
    $region8: #{tpu_custom_call.1} parent=1 // loop_exit
      _
    %1128 = vsyncpa [#allocation3], 1
    %s1129 = scalar_lea.sflag [#allocation3], 1
    %1130 = vsyncpa %s1129, 1

</llo_original>
